<compile_context>
chip_gen: v7x
topology: tpu7x:2x2x1
jax: 0.10.0
libtpu: 0.0.40
codegen_flags: <defaults>
</compile_context>

<pallas_src>
import functools

import jax
import jax.numpy as jnp
from jax.experimental import pallas as pl
from jax.experimental.pallas import tpu as pltpu

LANE = 128          # lane width
BF16_SUBLANE = 16   # bf16 sublane packing


def _round_up(n, m):
    return ((n + m - 1) // m) * m


# ----------------------------------------------------------------------------
# Pallas kernel: the whole Decoder MLP, fused.  Shapes are tiny (B=2,
# features <= 256) so every array is fully VMEM-resident; no grid / tiling.
# All parameters live in one packed bf16 buffer p_ref; static row/col slices
# pull out each weight matrix / bias row.
# ----------------------------------------------------------------------------
def decoder_kernel(x_ref, p_ref, o_ref, *,
                   emb, h0, h1, fout, r0, r1, rl, rb0, rb1, rbl):
    x = x_ref[...].astype(jnp.bfloat16)                       # (B, emb)

    w0 = p_ref[r0:r0 + emb, 0:h0]                             # (emb, h0) bf16
    w1 = p_ref[r1:r1 + h0, 0:h1]                              # (h0, h1)  bf16
    wl = p_ref[rl:rl + h1, 0:fout]                            # (h1, fout) bf16
    b0 = p_ref[rb0:rb0 + 1, 0:h0].astype(jnp.float32)         # (1, h0)  folded BN
    b1 = p_ref[rb1:rb1 + 1, 0:h1].astype(jnp.float32)         # (1, h1)
    bl = p_ref[rbl:rbl + 1, 0:fout].astype(jnp.float32)       # (1, fout)

    # dense_0 (eval-mode BatchNorm folded into weights/bias host-side) + ReLU.
    # Elementwise kept in f32: portable to v5e (no bf16 VPU/EUP).
    y = jnp.dot(x, w0, preferred_element_type=jnp.float32) + b0
    y = jnp.maximum(y, 0.0)
    # drpt_0: Identity (no dropout configured for layer 0).

    # dense_1 (bn_1 = Identity) + ReLU.
    y = jnp.dot(y.astype(jnp.bfloat16), w1,
                preferred_element_type=jnp.float32) + b1
    y = jnp.maximum(y, 0.0)
    # TODO(synk): training-mode dropout (p=0.1, random mask) not implemented;
    # eval-mode identity only.

    # lastLayer + sigmoid.
    y = jnp.dot(y.astype(jnp.bfloat16), wl,
                preferred_element_type=jnp.float32) + bl
    o_ref[...] = jax.nn.sigmoid(y).astype(o_ref.dtype)


# ----------------------------------------------------------------------------
# Host-side parameter folding / packing: BN fold + single bf16 param buffer.
# ----------------------------------------------------------------------------
def fold_and_pack(params):
    (w0, b0, bn0_scale, bn0_shift, w1, b1, wl, bl) = params
    emb, h0 = w0.shape
    h1 = w1.shape[1]
    fout = wl.shape[1]

    # y = (x@w0 + b0) * s + t  ==  x @ (w0*s) + (b0*s + t)
    w0f = w0 * bn0_scale
    b0f = b0 * bn0_scale + bn0_shift

    # Row layout of the packed buffer (columns padded to a lane multiple):
    #   [0,      emb)          w0 (cols 0:h0)
    #   [emb,    emb+h0)       w1 (cols 0:h1)
    #   [.. ,    ..+h1)        wl (cols 0:fout)
    #   rb0 / rb1 / rbl        bias rows (bias0 / b1 / bl)
    r0 = 0
    r1 = r0 + emb
    rl = r1 + h0
    rb0 = rl + h1
    rb1 = rb0 + 1
    rbl = rb1 + 1
    rows = _round_up(rbl + 1, BF16_SUBLANE)
    cols = _round_up(max(h0, h1, fout), LANE)

    buf = jnp.zeros((rows, cols), jnp.float32)
    buf = buf.at[r0:r0 + emb, 0:h0].set(w0f)
    buf = buf.at[r1:r1 + h0, 0:h1].set(w1)
    buf = buf.at[rl:rl + h1, 0:fout].set(wl)
    buf = buf.at[rb0, 0:h0].set(b0f[0])
    buf = buf.at[rb1, 0:h1].set(b1[0])
    buf = buf.at[rbl, 0:fout].set(bl[0])
    packed = buf.astype(jnp.bfloat16)

    meta = (emb, h0, h1, fout, r0, r1, rl, rb0, rb1, rbl)
    return packed, meta


# ----------------------------------------------------------------------------
# Jitted wrapper: single pallas_call, 2 inputs, no pad/slice HLOs around it.
# ----------------------------------------------------------------------------
@functools.partial(jax.jit, static_argnames=("meta", "output_shape"))
def decoder_forward(x, packed, meta, output_shape):
    emb, h0, h1, fout, r0, r1, rl, rb0, rb1, rbl = meta
    B = x.shape[0]

    kernel = functools.partial(
        decoder_kernel,
        emb=emb, h0=h0, h1=h1, fout=fout,
        r0=r0, r1=r1, rl=rl, rb0=rb0, rb1=rb1, rbl=rbl)

    vmem = pl.BlockSpec(memory_space=pltpu.MemorySpace.VMEM)

    flops = 2 * B * (emb * h0 + h0 * h1 + h1 * fout)
    bytes_accessed = x.size * 4 + packed.size * 2 + B * fout * 2
    cost = pl.CostEstimate(flops=flops,
                           transcendentals=B * fout,      # sigmoid
                           bytes_accessed=bytes_accessed)

    y = pl.pallas_call(
        kernel,
        out_shape=jax.ShapeDtypeStruct((B, fout), jnp.bfloat16),
        in_specs=[vmem, vmem],
        out_specs=vmem,
        compiler_params=pltpu.CompilerParams(vmem_limit_bytes=4 * 1024 * 1024),
        cost_estimate=cost,
    )(x, packed)

    # bf16->f32 cast and the final metadata reshape fuse under jit.
    return y.astype(jnp.float32).reshape(output_shape)


# ----------------------------------------------------------------------------
# Deterministic parameter construction (PyTorch-equivalent, f32).
# ----------------------------------------------------------------------------
def make_params(key, embedding_size, hidden0, hidden1, final_out):
    ks = jax.random.split(key, 12)

    def linear(kw, kb, fan_in, fan_out):
        bound = 1.0 / jnp.sqrt(fan_in)
        w = jax.random.uniform(kw, (fan_in, fan_out), jnp.float32, -bound, bound)
        b = jax.random.uniform(kb, (1, fan_out), jnp.float32, -bound, bound)
        return w, b

    w0, b0 = linear(ks[0], ks[1], embedding_size, hidden0)
    w1, b1 = linear(ks[2], ks[3], hidden0, hidden1)
    wl, bl = linear(ks[4], ks[5], hidden1, final_out)

    # BatchNorm1d(hidden0), eval mode, expressed as scale/shift after dense_0.
    eps = 1e-5
    gamma = 1.0 + 0.1 * jax.random.normal(ks[6], (1, hidden0), jnp.float32)
    beta = 0.1 * jax.random.normal(ks[7], (1, hidden0), jnp.float32)
    running_mean = 0.05 * jax.random.normal(ks[8], (1, hidden0), jnp.float32)
    running_var = 1.0 + 0.1 * jnp.abs(jax.random.normal(ks[9], (1, hidden0), jnp.float32))
    inv_std = 1.0 / jnp.sqrt(running_var + eps)
    bn0_scale = gamma * inv_std
    bn0_shift = beta - running_mean * gamma * inv_std

    return (w0, b0, bn0_scale, bn0_shift, w1, b1, wl, bl)


if __name__ == "__main__":
    key = jax.random.PRNGKey(0)
    k_in, k_params = jax.random.split(key)

    batch = 2
    embedding_size = 32              # USE_PROJ=False -> first Linear in_features
    hidden0, hidden1 = 64, 128
    output_shape = (batch, 4, 8, 8)  # len > 3 -> finalOutputSize = 4*8*8 = 256
    final_out = 4 * 8 * 8

    x = jax.random.normal(k_in, (batch, embedding_size), jnp.float32)
    params = make_params(k_params, embedding_size, hidden0, hidden1, final_out)
    packed, meta = fold_and_pack(params)

    out = decoder_forward(x, packed, meta, output_shape)
    out = jax.block_until_ready(out)

    # Pure-f32 PyTorch-semantics reference.  Kernel uses bf16 weights/biases
    # with f32 accumulation and a bf16 output store, so tolerance is relaxed.
    w0, b0, s0, t0, w1, b1, wl, bl = params
    ref = x @ w0 + b0
    ref = ref * s0 + t0
    ref = jnp.maximum(ref, 0.0)
    ref = jnp.maximum(ref @ w1 + b1, 0.0)
    ref = jax.nn.sigmoid(ref @ wl + bl)
    ref = ref.reshape(output_shape)

    assert out.shape == output_shape
    max_err = float(jnp.max(jnp.abs(out - ref)))
    assert max_err < 3e-2, f"max abs error {max_err}"
    print("KERNEL_OK")
</pallas_src>

<mosaic_0001>
module attributes {stable_mosaic.version = 11 : i64} {
  func.func @decoder_kernel(%arg0: memref<2x32xf32, #tpu.memory_space<vmem>>, %arg1: memref<240x256xbf16, #tpu.memory_space<vmem>>, %arg2: memref<2x256xbf16, #tpu.memory_space<vmem>>) attributes {dimension_semantics = [], scalar_prefetch = 0 : i64, scratch_operands = 0 : i64, tpu.core_type = #tpu.core_type<tc>} {
    %c0 = arith.constant 0 : index
    %c0_0 = arith.constant 0 : index
    %0 = vector.load %arg0[%c0, %c0_0] : memref<2x32xf32, #tpu.memory_space<vmem>>, vector<2x32xf32>
    %1 = arith.truncf %0 : vector<2x32xf32> to vector<2x32xbf16>
    %c0_1 = arith.constant 0 : index
    %c0_2 = arith.constant 0 : index
    %2 = vector.load %arg1[%c0_1, %c0_2] : memref<240x256xbf16, #tpu.memory_space<vmem>>, vector<32x64xbf16>
    %c32 = arith.constant 32 : index
    %c0_3 = arith.constant 0 : index
    %3 = vector.load %arg1[%c32, %c0_3] : memref<240x256xbf16, #tpu.memory_space<vmem>>, vector<64x128xbf16>
    %c96 = arith.constant 96 : index
    %c0_4 = arith.constant 0 : index
    %4 = vector.load %arg1[%c96, %c0_4] : memref<240x256xbf16, #tpu.memory_space<vmem>>, vector<128x256xbf16>
    %c224 = arith.constant 224 : index
    %c0_5 = arith.constant 0 : index
    %5 = vector.load %arg1[%c224, %c0_5] : memref<240x256xbf16, #tpu.memory_space<vmem>>, vector<1x64xbf16>
    %6 = arith.extf %5 : vector<1x64xbf16> to vector<1x64xf32>
    %c225 = arith.constant 225 : index
    %c0_6 = arith.constant 0 : index
    %7 = vector.load %arg1[%c225, %c0_6] : memref<240x256xbf16, #tpu.memory_space<vmem>>, vector<1x128xbf16>
    %8 = arith.extf %7 : vector<1x128xbf16> to vector<1x128xf32>
    %c226 = arith.constant 226 : index
    %c0_7 = arith.constant 0 : index
    %9 = vector.load %arg1[%c226, %c0_7] : memref<240x256xbf16, #tpu.memory_space<vmem>>, vector<1x256xbf16>
    %10 = arith.extf %9 : vector<1x256xbf16> to vector<1x256xf32>
    %cst = arith.constant dense<0.000000e+00> : vector<2x64xf32>
    %11 = tpu.matmul %1, %2, %cst {dimension_numbers = #tpu.dot_dimension_numbers<[1], [0], [0], [1], [0, 0, 1, 1], [], []>} : vector<2x32xbf16>, vector<32x64xbf16>, vector<2x64xf32> -> vector<2x64xf32>
    %12 = vector.broadcast %6 : vector<1x64xf32> to vector<2x64xf32>
    %13 = arith.addf %11, %12 : vector<2x64xf32>
    %cst_8 = arith.constant 0.000000e+00 : f32
    %14 = vector.broadcast %cst_8 : f32 to vector<2x64xf32>
    %15 = arith.maximumf %13, %14 : vector<2x64xf32>
    %16 = arith.truncf %15 : vector<2x64xf32> to vector<2x64xbf16>
    %cst_9 = arith.constant dense<0.000000e+00> : vector<2x128xf32>
    %17 = tpu.matmul %16, %3, %cst_9 {dimension_numbers = #tpu.dot_dimension_numbers<[1], [0], [0], [1], [0, 0, 1, 1], [], []>} : vector<2x64xbf16>, vector<64x128xbf16>, vector<2x128xf32> -> vector<2x128xf32>
    %18 = vector.broadcast %8 : vector<1x128xf32> to vector<2x128xf32>
    %19 = arith.addf %17, %18 : vector<2x128xf32>
    %cst_10 = arith.constant 0.000000e+00 : f32
    %20 = vector.broadcast %cst_10 : f32 to vector<2x128xf32>
    %21 = arith.maximumf %19, %20 : vector<2x128xf32>
    %22 = arith.truncf %21 : vector<2x128xf32> to vector<2x128xbf16>
    %cst_11 = arith.constant dense<0.000000e+00> : vector<2x256xf32>
    %23 = tpu.matmul %22, %4, %cst_11 {dimension_numbers = #tpu.dot_dimension_numbers<[1], [0], [0], [1], [0, 0, 1, 1], [], []>} : vector<2x128xbf16>, vector<128x256xbf16>, vector<2x256xf32> -> vector<2x256xf32>
    %24 = vector.broadcast %10 : vector<1x256xf32> to vector<2x256xf32>
    %25 = arith.addf %23, %24 : vector<2x256xf32>
    %26 = arith.negf %25 : vector<2x256xf32>
    %27 = math.exp %26 : vector<2x256xf32>
    %cst_12 = arith.constant 1.000000e+00 : f32
    %28 = vector.broadcast %cst_12 : f32 to vector<2x256xf32>
    %29 = arith.addf %28, %27 : vector<2x256xf32>
    %30 = arith.divf %28, %29 : vector<2x256xf32>
    %31 = arith.truncf %30 : vector<2x256xf32> to vector<2x256xbf16>
    %c0_13 = arith.constant 0 : index
    %c0_14 = arith.constant 0 : index
    %32 = vector.load %arg2[%c0_13, %c0_14] : memref<2x256xbf16, #tpu.memory_space<vmem>>, vector<2x256xbf16>
    tpu.vector_store %arg2[%c0_13, %c0_14], %31 {strides = array<i32>} : memref<2x256xbf16, #tpu.memory_space<vmem>>, vector<2x256xbf16>,
    return
  }
}

</mosaic_0001>

<llo_original>
// kernel: decoder_forward.1
$region0: #{decoder_forward.1}
  #allocation0 [shape = 'u32[]', space=smem, size = 0x4, offset = 0x4, fixed_abs, tag = 'smem constant byte address 0x4 - core index']
  #allocation1 [shape = 'u32[144,128]{1,0:T(1,128)}', space=vmem, size = 0x12000, scoped, tag = 'internal scratch']
  %s0 = inlined_call_operand.hbm [shape: f32[2,32], index: 0, kind: input, shape index: {}]
  %s1 = inlined_call_operand.hbm [shape: bf16[240,256], index: 1, kind: input, shape index: {}]
  %s2 = inlined_call_operand.vmem [shape: bf16[2,256], index: 2, kind: output, shape index: {}]
  %s3 = sld [smem:[#allocation0]]
  $region26: #{decoder_forward.1} parent=0
    _
  %s5 = ssub.s32 1, %s3
  %s6 = scalar_select 0, %s5, %s3
  $region1: #{decoder_forward.1} parent=0
    #allocation2 [shape = 'u8[1024]{0}', space=vmem, size = 0x400, scoped, tag = 'input window, operand 0, single buffered']
    #allocation3 [shape = 's32[1]{0}', space=sflag, size = 0x4, scoped, tag = 'scoped memory for decoder_forward.1']
    #allocation4 [shape = 'u8[122880]{0}', space=vmem, size = 0x1e000, scoped, tag = 'input window, operand 1, single buffered']
    #allocation5 [shape = 's32[1]{0}', space=sflag, size = 0x4, scoped, tag = 'scoped memory for decoder_forward.1']
    %7 = vsyncpa [#allocation3], 0
    %8 = vsyncpa [#allocation5], 0
    // Predicated region
    $region2: #{decoder_forward.1} parent=1 // pred_check
      _
    $region3: #{decoder_forward.1} parent=1 // pred_check_branch
      %10 = sbr.rel (0) target = $region5
    $region4: #{decoder_forward.1} parent=1 // pred_region
      %s12 = ssub.s32 32, 32
      %13 = vsyncadd [#allocation3], %s12
      %s15 = sshll.u32 [#allocation2], 4
      %s16 = int_to_ptr.vmem [resolvable:$true] %s15
      %18 = dma.hbm_to_vmem [thread:$0]  %s0, 32, %s16, [#allocation3]
    $region5: #{decoder_forward.1} parent=1 // pred_fallthru
      _
    // Predicated region
    $region6: #{decoder_forward.1} parent=1 // pred_check
      _
    $region7: #{decoder_forward.1} parent=1 // pred_check_branch
      %20 = sbr.rel (0) target = $region9
    $region8: #{decoder_forward.1} parent=1 // pred_region
      %s22 = ssub.s32 3840, 3840
      %23 = vsyncadd [#allocation5], %s22
      %s24 = sshll.u32 [#allocation4], 4
      %s25 = int_to_ptr.vmem [resolvable:$true] %s24
      %30 = dma.hbm_to_vmem [thread:$0]  %s1, 3840, %s25, [#allocation5], 128, 128, 8
    $region9: #{decoder_forward.1} parent=1 // pred_fallthru
      _
    // Predicated region
    $region10: #{decoder_forward.1} parent=1 // pred_check
      _
    $region11: #{decoder_forward.1} parent=1 // pred_check_branch
      %32 = sbr.rel (0) target = $region13
    $region12: #{decoder_forward.1} parent=1 // pred_region
      %33 = dma.done [#allocation3], 32
    $region13: #{decoder_forward.1} parent=1 // pred_fallthru
      _
    // Predicated region
    $region14: #{decoder_forward.1} parent=1 // pred_check
      _
    $region15: #{decoder_forward.1} parent=1 // pred_check_branch
      %35 = sbr.rel (0) target = $region17
    $region16: #{decoder_forward.1} parent=1 // pred_region
      %36 = dma.done [#allocation5], 3840
    $region17: #{decoder_forward.1} parent=1 // pred_fallthru
      _
    %v38 = vld [vmem:[#allocation2] sm:$0x3]
    %v39 = vpack.c.bf16 %v38, %v38
    %v40 = vld [vmem:[#allocation4] sm:$0xf]
    %v41 = vld [vmem:[#allocation4 + $0x8] sm:$0xf]
    %v42 = vld [vmem:[#allocation4 + $0x10] sm:$0xf]
    %v43 = vld [vmem:[#allocation4 + $0x18] sm:$0xf]
    %v44 = vld [vmem:[#allocation4 + $0x20] sm:$0xf]
    %v45 = vld [vmem:[#allocation4 + $0x28] sm:$0xf]
    %v46 = vld [vmem:[#allocation4 + $0x30] sm:$0xf]
    %v47 = vld [vmem:[#allocation4 + $0x38] sm:$0xf]
    %v48 = vld [vmem:[#allocation4 + $0x40] sm:$0xf]
    %v49 = vld [vmem:[#allocation4 + $0x48] sm:$0xf]
    %v50 = vld [vmem:[#allocation4 + $0x50] sm:$0xf]
    %v51 = vld [vmem:[#allocation4 + $0x58] sm:$0xf]
    %v52 = vld [vmem:[#allocation4 + $0x60] sm:$0xff]
    %v53 = vld [vmem:[#allocation4 + $0x68] sm:$0xff]
    %v54 = vld [vmem:[#allocation4 + $0x70] sm:$0xff]
    %v55 = vld [vmem:[#allocation4 + $0x78] sm:$0xff]
    %v56 = vld [vmem:[#allocation4 + $0x80] sm:$0xff]
    %v57 = vld [vmem:[#allocation4 + $0x88] sm:$0xff]
    %v58 = vld [vmem:[#allocation4 + $0x90] sm:$0xff]
    %v59 = vld [vmem:[#allocation4 + $0x98] sm:$0xff]
    %v60 = vld [vmem:[#allocation4 + $0xa0] sm:$0xff]
    %v61 = vld [vmem:[#allocation4 + $0xa8] sm:$0xff]
    %v62 = vld [vmem:[#allocation4 + $0xb0] sm:$0xff]
    %v63 = vld [vmem:[#allocation4 + $0xb8] sm:$0xff]
    %v64 = vld [vmem:[#allocation4 + $0xc0] sm:$0xff]
    %v65 = vld [vmem:[#allocation4 + $0xc8] sm:$0xff]
    %v66 = vld [vmem:[#allocation4 + $0xd0] sm:$0xff]
    %v67 = vld [vmem:[#allocation4 + $0xd8] sm:$0xff]
    %v68 = vld [vmem:[#allocation4 + $0xe0] sm:$0x1]
    %v69 = vunpack.c.l.bf16 %v68
    %v70 = vld [vmem:[#allocation4 + $0xe0] sm:$0x22]
    %v71 = vunpack.c.l.bf16 %v70
    %v72 = vunpack.c.h.bf16 %v70
    %v73 = vlaneseq
    %v74 = vshrl.u32 %v73, 7
    %v75 = vsub.s32 0, %v74
    %v76 = vrot.slane %v69, %v75
    %v81 = vunpack.c.l.b16 %v40
    %v82 = vunpack.c.l.b16 %v41
    %v83 = vunpack.c.l.b16 %v42
    %v84 = vunpack.c.l.b16 %v43
    %v85 = vpack.c.b16 %v82, %v81
    %v86 = vpack.c.b16 %v84, %v83
    %vm89 = vcmask 261120
    %v91 = vsel %vm89, %v39, 0
    %93 = vmatprep.subr.bf16.mxu0 0
    %94 = vmatpush1.bf16.msra.mxu0 %v85
    %95 = vmatprep.subr.bf16.mxu0 0
    %96 = vmatpush1.bf16.msra.mxu0 %v86
    %97 = vmatprep.subr.bf16.mxu0 0
    %98 = vmatpush1.bf16.msra.mxu0 0
    %99 = vmatprep.subr.bf16.mxu0 0
    %100 = vmatpush1.bf16.msra.mxu0 0
    %101 = vmatprep.subr.bf16.mxu0 0
    %102 = vmatpush1.bf16.msra.mxu0 0
    %103 = vmatprep.subr.bf16.mxu0 0
    %104 = vmatpush1.bf16.msra.mxu0 0
    %105 = vmatprep.subr.bf16.mxu0 0
    %106 = vmatpush1.bf16.msra.mxu0 0
    %107 = vmatprep.subr.bf16.mxu0 0
    %108 = vmatpush1.bf16.msra.mxu0 0
    %109 = vmatprep.subr.bf16.mxu0 0
    %110 = vmatpush1.bf16.msra.mxu0 0
    %111 = vmatprep.subr.bf16.mxu0 0
    %112 = vmatpush1.bf16.msra.mxu0 0
    %113 = vmatprep.subr.bf16.mxu0 0
    %114 = vmatpush1.bf16.msra.mxu0 0
    %115 = vmatprep.subr.bf16.mxu0 0
    %116 = vmatpush1.bf16.msra.mxu0 0
    %117 = vmatprep.subr.bf16.mxu0 0
    %118 = vmatpush1.bf16.msra.mxu0 0
    %119 = vmatprep.subr.bf16.mxu0 0
    %120 = vmatpush1.bf16.msra.mxu0 0
    %121 = vmatprep.subr.bf16.mxu0 0
    %122 = vmatpush1.bf16.msra.mxu0 0
    %123 = vmatprep.subr.bf16.mxu0 0
    %124 = vmatpush1.bf16.msra.mxu0 0
    %125 = vmatprep.mubr.bf16.mxu0 0
    %126 = vmatmul.mubr.bf16.gmra.mrb[0].mxu0 %v91
    %v127 = vpop.f32.mrb[0].mxu0
    %v128 = vadd.f32 %v76, %v127
    %v129 = vpop.f32.mrb[0].mxu0
    %v130 = vpop.f32.mrb[0].mxu0
    %v131 = vpop.f32.mrb[0].mxu0
    %132 = vdwg.mxu0
    %v133 = vmax.f32 %v128, 0.0
    %v134 = vpack.c.bf16 %v133, %v133
    %v135 = vlaneseq
    %v136 = vshrl.u32 %v135, 7
    %v137 = vsub.s32 1, %v136
    %v138 = vrot.slane %v69, %v137
    %v147 = vunpack.c.l.b16 %v44
    %v148 = vunpack.c.l.b16 %v45
    %v149 = vunpack.c.l.b16 %v46
    %v150 = vunpack.c.l.b16 %v47
    %v151 = vunpack.c.l.b16 %v48
    %v152 = vunpack.c.l.b16 %v49
    %v153 = vunpack.c.l.b16 %v50
    %v154 = vunpack.c.l.b16 %v51
    %v155 = vpack.c.b16 %v148, %v147
    %v156 = vpack.c.b16 %v150, %v149
    %v157 = vpack.c.b16 %v152, %v151
    %v158 = vpack.c.b16 %v154, %v153
    %vm163 = vcmask 523264
    %v165 = vsel %vm163, %v134, 0
    %167 = vmatprep.subr.bf16.mxu0 0
    %168 = vmatpush1.bf16.msra.mxu0 %v155
    %169 = vmatprep.subr.bf16.mxu0 0
    %170 = vmatpush1.bf16.msra.mxu0 %v156
    %171 = vmatprep.subr.bf16.mxu0 0
    %172 = vmatpush1.bf16.msra.mxu0 %v157
    %173 = vmatprep.subr.bf16.mxu0 0
    %174 = vmatpush1.bf16.msra.mxu0 %v158
    %175 = vmatprep.subr.bf16.mxu0 0
    %176 = vmatpush1.bf16.msra.mxu0 0
    %177 = vmatprep.subr.bf16.mxu0 0
    %178 = vmatpush1.bf16.msra.mxu0 0
    %179 = vmatprep.subr.bf16.mxu0 0
    %180 = vmatpush1.bf16.msra.mxu0 0
    %181 = vmatprep.subr.bf16.mxu0 0
    %182 = vmatpush1.bf16.msra.mxu0 0
    %183 = vmatprep.subr.bf16.mxu0 0
    %184 = vmatpush1.bf16.msra.mxu0 0
    %185 = vmatprep.subr.bf16.mxu0 0
    %186 = vmatpush1.bf16.msra.mxu0 0
    %187 = vmatprep.subr.bf16.mxu0 0
    %188 = vmatpush1.bf16.msra.mxu0 0
    %189 = vmatprep.subr.bf16.mxu0 0
    %190 = vmatpush1.bf16.msra.mxu0 0
    %191 = vmatprep.subr.bf16.mxu0 0
    %192 = vmatpush1.bf16.msra.mxu0 0
    %193 = vmatprep.subr.bf16.mxu0 0
    %194 = vmatpush1.bf16.msra.mxu0 0
    %195 = vmatprep.subr.bf16.mxu0 0
    %196 = vmatpush1.bf16.msra.mxu0 0
    %197 = vmatprep.subr.bf16.mxu0 0
    %198 = vmatpush1.bf16.msra.mxu0 0
    %199 = vmatprep.mubr.bf16.mxu0 0
    %200 = vmatmul.mubr.bf16.gmra.mrb[0].mxu0 %v165
    %v201 = vpop.f32.mrb[0].mxu0
    %v202 = vadd.f32 %v138, %v201
    %v203 = vpop.f32.mrb[0].mxu0
    %v204 = vpop.f32.mrb[0].mxu0
    %v205 = vpop.f32.mrb[0].mxu0
    %206 = vdwg.mxu0
    %v207 = vmax.f32 %v202, 0.0
    %v208 = vpack.c.bf16 %v207, %v207
    %v209 = vlaneseq
    %v210 = vshrl.u32 %v209, 7
    %v211 = vsub.s32 2, %v210
    %v212 = vrot.slane %v71, %v211
    %v213 = vlaneseq
    %v214 = vshrl.u32 %v213, 7
    %v215 = vsub.s32 2, %v214
    %v216 = vrot.slane %v72, %v215
    %v233 = vunpack.c.l.b16 %v52
    %v234 = vunpack.c.h.b16 %v52
    %v235 = vunpack.c.l.b16 %v53
    %v236 = vunpack.c.h.b16 %v53
    %v237 = vunpack.c.l.b16 %v54
    %v238 = vunpack.c.h.b16 %v54
    %v239 = vunpack.c.l.b16 %v55
    %v240 = vunpack.c.h.b16 %v55
    %v241 = vunpack.c.l.b16 %v56
    %v242 = vunpack.c.h.b16 %v56
    %v243 = vunpack.c.l.b16 %v57
    %v244 = vunpack.c.h.b16 %v57
    %v245 = vunpack.c.l.b16 %v58
    %v246 = vunpack.c.h.b16 %v58
    %v247 = vunpack.c.l.b16 %v59
    %v248 = vunpack.c.h.b16 %v59
    %v249 = vunpack.c.l.b16 %v60
    %v250 = vunpack.c.h.b16 %v60
    %v251 = vunpack.c.l.b16 %v61
    %v252 = vunpack.c.h.b16 %v61
    %v253 = vunpack.c.l.b16 %v62
    %v254 = vunpack.c.h.b16 %v62
    %v255 = vunpack.c.l.b16 %v63
    %v256 = vunpack.c.h.b16 %v63
    %v257 = vunpack.c.l.b16 %v64
    %v258 = vunpack.c.h.b16 %v64
    %v259 = vunpack.c.l.b16 %v65
    %v260 = vunpack.c.h.b16 %v65
    %v261 = vunpack.c.l.b16 %v66
    %v262 = vunpack.c.h.b16 %v66
    %v263 = vunpack.c.l.b16 %v67
    %v264 = vunpack.c.h.b16 %v67
    %v265 = vpack.c.b16 %v235, %v233
    %v266 = vpack.c.b16 %v236, %v234
    %v267 = vpack.c.b16 %v239, %v237
    %v268 = vpack.c.b16 %v240, %v238
    %v269 = vpack.c.b16 %v243, %v241
    %v270 = vpack.c.b16 %v244, %v242
    %v271 = vpack.c.b16 %v247, %v245
    %v272 = vpack.c.b16 %v248, %v246
    %v273 = vpack.c.b16 %v251, %v249
    %v274 = vpack.c.b16 %v252, %v250
    %v275 = vpack.c.b16 %v255, %v253
    %v276 = vpack.c.b16 %v256, %v254
    %v277 = vpack.c.b16 %v259, %v257
    %v278 = vpack.c.b16 %v260, %v258
    %v279 = vpack.c.b16 %v263, %v261
    %v280 = vpack.c.b16 %v264, %v262
    %297 = vmatprep.subr.bf16.mxu0 %v266
    %298 = vmatpush1.bf16.msra.mxu0 %v265
    %299 = vmatprep.subr.bf16.mxu0 %v268
    %300 = vmatpush1.bf16.msra.mxu0 %v267
    %301 = vmatprep.subr.bf16.mxu0 %v270
    %302 = vmatpush1.bf16.msra.mxu0 %v269
    %303 = vmatprep.subr.bf16.mxu0 %v272
    %304 = vmatpush1.bf16.msra.mxu0 %v271
    %305 = vmatprep.subr.bf16.mxu0 %v274
    %306 = vmatpush1.bf16.msra.mxu0 %v273
    %307 = vmatprep.subr.bf16.mxu0 %v276
    %308 = vmatpush1.bf16.msra.mxu0 %v275
    %309 = vmatprep.subr.bf16.mxu0 %v278
    %310 = vmatpush1.bf16.msra.mxu0 %v277
    %311 = vmatprep.subr.bf16.mxu0 %v280
    %312 = vmatpush1.bf16.msra.mxu0 %v279
    %313 = vmatprep.subr.bf16.mxu0 0
    %314 = vmatpush1.bf16.msra.mxu0 0
    %315 = vmatprep.subr.bf16.mxu0 0
    %316 = vmatpush1.bf16.msra.mxu0 0
    %317 = vmatprep.subr.bf16.mxu0 0
    %318 = vmatpush1.bf16.msra.mxu0 0
    %319 = vmatprep.subr.bf16.mxu0 0
    %320 = vmatpush1.bf16.msra.mxu0 0
    %321 = vmatprep.subr.bf16.mxu0 0
    %322 = vmatpush1.bf16.msra.mxu0 0
    %323 = vmatprep.subr.bf16.mxu0 0
    %324 = vmatpush1.bf16.msra.mxu0 0
    %325 = vmatprep.subr.bf16.mxu0 0
    %326 = vmatpush1.bf16.msra.mxu0 0
    %327 = vmatprep.subr.bf16.mxu0 0
    %328 = vmatpush1.bf16.msra.mxu0 0
    %329 = vmatprep.mubr.bf16.mxu0 0
    %330 = vmatmul.mubr.bf16.gmra.mrb[0].mxu0 %v208
    %v331 = vpop.f32.mrb[0].mxu0
    %v332 = vadd.f32 %v212, %v331
    %v333 = vpop.f32.mrb[0].mxu0
    %v334 = vadd.f32 %v216, %v333
    %v335 = vpop.f32.mrb[0].mxu0
    %v336 = vpop.f32.mrb[0].mxu0
    %337 = vdwg.mxu0
    %v338 = vxor.u32 %v332, 2147483648
    %v339 = vxor.u32 %v334, 2147483648
    %v340 = vmul.f32 %v338, 1.442695
    %v341 = vpow.pop %v340
    %v342 = vmul.f32 %v339, 1.442695
    %v343 = vpow.pop %v342
    %v344 = vadd.f32 %v341, 1.0
    %v345 = vadd.f32 %v343, 1.0
    %v346 = vrcp.pop %v344
    %v347 = vmul.f32 1.0, %v346
    %v348 = vrcp.pop %v345
    %v349 = vmul.f32 1.0, %v348
    %v350 = vpack.c.bf16 %v347, %v347
    %v351 = vpack.c.bf16 %v349, %v349
    %v354 = vcombine.low %v350, %v351
    %v356 = vunpack.c.l.s4 1966171168
    %v357 = vunpack.c.0.s8 %v356
    %v358 = vlaneseq
    %v359 = vshrl.u32 %v358, 7
    %v360 = vsub.s32 %v357, %v359
    %v361 = vrot.slane %v354, %v360
    %v363 = vunpack.c.l.s4 1966171168
    %v364 = vunpack.c.0.s8 %v363
    %v365 = vlaneseq
    %v366 = vshrl.u32 %v365, 7
    %v367 = vsub.s32 %v364, %v366
    %v368 = vrot.slane %v361, %v367
    %370 = vst [vmem:[%s2] sm:$0x3] %v368
    // Predicated region
    $region18: #{decoder_forward.1} parent=1 // pred_check
      _
    $region19: #{decoder_forward.1} parent=1 // pred_check_branch
      %372 = sbr.rel (0) target = $region21
    $region20: #{decoder_forward.1} parent=1 // pred_region
      _
    $region21: #{decoder_forward.1} parent=1 // pred_fallthru
      _
    // Predicated region
    $region22: #{decoder_forward.1} parent=1 // pred_check
      _
    $region23: #{decoder_forward.1} parent=1 // pred_check_branch
      %374 = sbr.rel (0) target = $region25
    $region24: #{decoder_forward.1} parent=1 // pred_region
      _
    $region25: #{decoder_forward.1} parent=1 // pred_fallthru
      _
    %375 = vsyncpa [#allocation3], 1
    %376 = vsyncpa [#allocation5], 1

</llo_original>
